<compile_context>
chip_gen: v5e
topology: v5e:2x2
jax: 0.10.0
libtpu: 0.0.40
codegen_flags: <defaults>
</compile_context>

<pallas_src>
import functools
import math

import jax
import jax.numpy as jnp
from jax.experimental import pallas as pl
from jax.experimental.pallas import tpu as pltpu


def _round_up(x: int, m: int) -> int:
    return (x + m - 1) // m * m


# ---------------------------------------------------------------------------
# Path 1: small table, resident in VMEM (no HBM row DMAs, no descriptors).
# ---------------------------------------------------------------------------
def _vmem_lookup_kernel(tok_ref, table_ref, out_ref, *, scale, tile):
    """tok_ref: (n_pad,) int32 in SMEM (scalar prefetch)
    table_ref: (vocab, emb) table block, VMEM-resident (constant index_map)
    out_ref  : (tile, emb) output block in VMEM
    """
    base = pl.program_id(0) * tile

    # NOTE: a vectorized dynamic gather (jnp.take on the VMEM table) would be
    # preferred where the Mosaic gather lowering supports arbitrary-row
    # sublane gathers; the per-row dynamic slice below is exact and lowers on
    # all generations, and stays entirely in VMEM (no DMA descriptors).
    @pl.loop(0, tile)
    def _(t):
        tok = tok_ref[base + t]
        out_ref[pl.ds(t, 1), :] = table_ref[pl.ds(tok, 1), :] * scale


# ---------------------------------------------------------------------------
# Path 2: large table stays in HBM; per-row DMA gather directly into out_ref.
# ---------------------------------------------------------------------------
def _dma_gather_kernel(tok_ref, table_hbm, out_ref, sems, *, scale, tile, depth):
    """tok_ref  : (n_pad,) int32 in SMEM (scalar prefetch)
    table_hbm: (vocab, emb) table, HBM-resident (pl.ANY)
    out_ref  : (tile, emb) output block in VMEM (DMA destination)
    sems     : (depth,) DMA semaphore ring -> `depth` row DMAs in flight
    """
    base = pl.program_id(0) * tile

    def row_copy(t, tok, slot):
        # start() and wait() descriptors have identical (1, emb) byte counts.
        return pltpu.make_async_copy(
            table_hbm.at[pl.ds(tok, 1), :],
            out_ref.at[pl.ds(t, 1), :],
            sems.at[slot])

    # Prologue: fill the ring (statically unrolled, `depth` iterations).
    for t in range(depth):
        row_copy(t, tok_ref[base + t], t).start()

    # Steady state: straight-line body, no predication.  The SMEM id read for
    # row t is issued *before* the wait on slot (t - depth).
    @pl.loop(depth, tile)
    def _(t):
        slot = t & (depth - 1)            # depth is a power of two -> cheap mask
        tok = tok_ref[base + t]           # read id before the DMA wait
        row_copy(t - depth, 0, slot).wait()
        row_copy(t, tok, slot).start()

    # Drain the last `depth` copies (statically unrolled).
    for t in range(tile - depth, tile):
        row_copy(t, 0, t & (depth - 1)).wait()

    # Rows were gathered directly into the output block; scale in place.
    out_ref[...] = out_ref[...] * scale


# ---------------------------------------------------------------------------
# Wrapper
# ---------------------------------------------------------------------------
def token_embedding(tokens, emb_table, *, token_tile=256, dma_depth=16,
                    gather_impl=None):
    """TokenEmbedding forward: emb_table[tokens] * sqrt(emb_size).

    tokens     : integer ids of any shape
    emb_table  : (vocab, emb) float table
    gather_impl: None (auto), "vmem" (table resident in VMEM) or "dma"
                 (HBM-resident table, manual row-DMA gather)
    Returns tokens.shape + (emb,) in emb_table.dtype.
    """
    vocab, emb = emb_table.shape
    scale = math.sqrt(emb)                      # sqrt of the *model* emb size
    out_dtype = emb_table.dtype
    elem = jnp.dtype(out_dtype).itemsize

    tok_shape = tokens.shape
    n = 1
    for d in tok_shape:
        n *= int(d)
    tok_flat = tokens.reshape(n).astype(jnp.int32)

    # Per-generation VMEM budget (v7x: 64 MiB/TC, v5e/v6e: 128 MiB).
    try:
        vmem_cap = int(getattr(pltpu.get_tpu_info(), "vmem_capacity_bytes",
                               64 * 1024 * 1024))
    except Exception:                           # query unavailable -> v7x-safe
        vmem_cap = 64 * 1024 * 1024
    usable = max(16 * 1024 * 1024, (vmem_cap * 3) // 4)

    table_bytes = vocab * emb * elem
    if gather_impl is None:
        use_vmem = table_bytes <= min(8 * 1024 * 1024, usable // 4)
    else:
        use_vmem = (gather_impl == "vmem")

    # Token tile: sublane-pack aligned for the dtype, capped so the
    # double-buffered output block (+ resident table on the VMEM path) fits.
    pack = max(8, 32 // elem)                   # f32: 8, bf16: 16, int8: 32
    tile = max(pack, min(_round_up(token_tile, pack), _round_up(n, pack)))
    out_budget = usable - (table_bytes if use_vmem else 0) - 2 * 1024 * 1024
    out_budget = max(out_budget, 2 * pack * emb * elem)
    max_rows = max(pack, (out_budget // (2 * emb * elem)) // pack * pack)
    tile = min(tile, max_rows)

    n_pad = _round_up(n, tile)
    if n_pad != n:
        tok_flat = jnp.pad(tok_flat, (0, n_pad - n))   # pad id 0 -> valid row
    grid = (n_pad // tile,)

    if use_vmem:
        kernel = functools.partial(_vmem_lookup_kernel, scale=scale, tile=tile)
        in_specs = [pl.BlockSpec((vocab, emb), lambda i, tok: (0, 0))]  # resident
        scratch_shapes = []
        vmem_need = table_bytes + 2 * tile * emb * elem + 4 * 1024 * 1024
    else:
        depth = max(1, min(dma_depth, tile))
        depth = 1 << (depth.bit_length() - 1)   # power of two -> cheap slot mask
        kernel = functools.partial(_dma_gather_kernel, scale=scale, tile=tile,
                                   depth=depth)
        in_specs = [pl.BlockSpec(memory_space=pl.ANY)]   # table stays in HBM
        scratch_shapes = [pltpu.SemaphoreType.DMA((depth,))]
        vmem_need = 2 * tile * emb * elem + 4 * 1024 * 1024

    out_flat = pl.pallas_call(
        kernel,
        out_shape=jax.ShapeDtypeStruct((n_pad, emb), out_dtype),
        grid_spec=pltpu.PrefetchScalarGridSpec(
            num_scalar_prefetch=1,                       # token ids -> SMEM
            grid=grid,
            in_specs=in_specs,
            out_specs=pl.BlockSpec((tile, emb), lambda i, tok: (i, 0)),
            scratch_shapes=scratch_shapes,
        ),
        compiler_params=pltpu.CompilerParams(
            dimension_semantics=("parallel",),
            vmem_limit_bytes=int(min(usable, max(vmem_need, 16 * 1024 * 1024))),
        ),
    )(tok_flat, emb_table)

    if n_pad != n:
        out_flat = out_flat[:n]
    return out_flat.reshape(*tok_shape, emb)


if __name__ == "__main__":
    vocab_size = 64
    emb_size = 32
    seq_len = 8
    batch = 2

    key = jax.random.PRNGKey(0)
    k_w, k_t = jax.random.split(key)

    # nn.Embedding default init: weight ~ N(0, 1)
    emb_table = jax.random.normal(k_w, (vocab_size, emb_size), dtype=jnp.float32)
    tokens = jax.random.randint(k_t, (seq_len, batch), 0, vocab_size,
                                dtype=jnp.int32)

    ref = emb_table[tokens] * math.sqrt(emb_size)

    # Auto path: small table -> VMEM-resident fast path.
    out_fast = token_embedding(tokens, emb_table)
    jax.block_until_ready(out_fast)
    assert out_fast.shape == (seq_len, batch, emb_size)
    assert jnp.allclose(out_fast, ref, atol=1e-5, rtol=1e-5)

    # Force the HBM DMA-gather path (used for large tables) on the same data.
    out_dma = token_embedding(tokens, emb_table, gather_impl="dma")
    jax.block_until_ready(out_dma)
    assert out_dma.shape == (seq_len, batch, emb_size)
    assert jnp.allclose(out_dma, ref, atol=1e-5, rtol=1e-5)

    print("KERNEL_OK")
</pallas_src>

<mosaic_0001>
module attributes {stable_mosaic.version = 11 : i64} {
  func.func @_vmem_lookup_kernel(%arg0: i32, %arg1: memref<16xi32, #tpu.memory_space<smem>>, %arg2: memref<64x32xf32, #tpu.memory_space<vmem>>, %arg3: memref<16x32xf32, #tpu.memory_space<vmem>>) attributes {dimension_semantics = [#tpu.dimension_semantics<parallel>], iteration_bounds = array<i64: 1>, scalar_prefetch = 1 : i64, scratch_operands = 0 : i64, tpu.core_type = #tpu.core_type<tc>, window_params = [{pipeline_mode = #tpu.pipeline_mode<synchronous>, transform_indices = @transform_0, window_bounds = array<i64: 64, 32>}, {transform_indices = @transform_1, window_bounds = array<i64: 16, 32>}]} {
    %c16_i32 = arith.constant 16 : i32
    %0 = arith.muli %arg0, %c16_i32 : i32
    %c0_i32 = arith.constant 0 : i32
    %c16_i32_0 = arith.constant 16 : i32
    %1 = arith.addi %c0_i32, %c16_i32_0 : i32
    %c1_i32 = arith.constant 1 : i32
    scf.for %arg4 = %c0_i32 to %1 step %c1_i32  : i32 {
      %c1_i32_2 = arith.constant 1 : i32
      %2 = arith.muli %arg4, %c1_i32_2 : i32
      %c0_i32_3 = arith.constant 0 : i32
      %3 = arith.addi %c0_i32_3, %2 : i32
      %4 = arith.addi %0, %3 : i32
      %5 = arith.index_cast %4 : i32 to index
      %6 = memref.load %arg1[%5] : memref<16xi32, #tpu.memory_space<smem>>
      %7 = arith.index_cast %6 : i32 to index
      %c0 = arith.constant 0 : index
      %8 = vector.load %arg2[%7, %c0] : memref<64x32xf32, #tpu.memory_space<vmem>>, vector<1x32xf32>
      %cst = arith.constant 5.65685415 : f32
      %9 = vector.broadcast %cst : f32 to vector<1x32xf32>
      %10 = arith.mulf %8, %9 : vector<1x32xf32>
      %11 = arith.index_cast %3 : i32 to index
      %c0_4 = arith.constant 0 : index
      %12 = vector.load %arg3[%11, %c0_4] : memref<16x32xf32, #tpu.memory_space<vmem>>, vector<1x32xf32>
      tpu.vector_store %arg3[%11, %c0_4], %10 {strides = array<i32>} : memref<16x32xf32, #tpu.memory_space<vmem>>, vector<1x32xf32>,
    }
    %c16_i32_1 = arith.constant 16 : i32
    return
  }
  func.func @transform_0(%arg0: i32, %arg1: memref<16xi32, #tpu.memory_space<smem>>) -> (i32, i32) {
    %c0_i32 = arith.constant 0 : i32
    %c0_i32_0 = arith.constant 0 : i32
    %c0_i32_1 = arith.constant 0 : i32
    return %c0_i32, %c0_i32_0 : i32, i32
  }
  func.func @transform_1(%arg0: i32, %arg1: memref<16xi32, #tpu.memory_space<smem>>) -> (i32, i32) {
    %c0_i32 = arith.constant 0 : i32
    %c0_i32_0 = arith.constant 0 : i32
    return %arg0, %c0_i32 : i32, i32
  }
}

</mosaic_0001>

<llo_original>
// kernel: tpu_custom_call.1
$region0: #{tpu_custom_call.1}
  #allocation0 [shape = 'u32[]', space=smem, size = 0x4, offset = 0x4, fixed_abs, tag = 'smem constant byte address 0x4 - core index']
  #allocation1 [shape = 'u32[72,128]{1,0:T(1,128)}', space=vmem, size = 0x9000, scoped, tag = 'internal scratch']
  #allocation2 [shape = 's32[1]{0}', space=sflag, size = 0x4, scoped, tag = 'scoped memory for tpu_custom_call.1']
  #allocation3 [shape = 'u8[512]{0}', space=smem, size = 0x200, scoped, tag = 'prefetched SMEM operand 0']
  %s0 = inlined_call_operand.vmem [shape: s32[16], index: 0, kind: input, shape index: {}]
  %s1 = inlined_call_operand.vmem [shape: f32[64,32], index: 1, kind: input, shape index: {}]
  %s2 = inlined_call_operand.hbm [shape: f32[16,32], index: 2, kind: output, shape index: {}]
  %s3 = sld [smem:[#allocation0]]
  $region21: #{tpu_custom_call.1} parent=0
    _
  %s5 = ssub.s32 1, %s3
  %s6 = scalar_select 0, %s5, %s3
  %s8 = sshll.u32 %s0, 4
  %s9 = int_to_ptr.vmem [resolvable:$true] %s8
  %11 = dma.vmem_to_smem %s9, 16, [#allocation3], [#allocation2]
  %13 = dma.done [#allocation2], 16
  %14 = sfence
  $region1: #{tpu_custom_call.1} parent=0
    #allocation4 [shape = 'u8[8192]{0}', space=vmem, size = 0x2000, scoped, tag = 'output window, operand 0, single buffered']
    #allocation5 [shape = 's32[1]{0}', space=sflag, size = 0x4, scoped, tag = 'scoped memory for tpu_custom_call.1']
    %15 = vsyncpa [#allocation5], 0
    // Predicated region
    $region2: #{tpu_custom_call.1} parent=1 // pred_check
      _
    $region3: #{tpu_custom_call.1} parent=1 // pred_check_branch
      %17 = sbr.rel (0) target = $region5
    $region4: #{tpu_custom_call.1} parent=1 // pred_region
      _
    $region5: #{tpu_custom_call.1} parent=1 // pred_fallthru
      _
    %s18 = smul.u32 0, 16
    loop: start=0, step=1, limit=16
    $region6: #{tpu_custom_call.1} parent=1 // loop_pre_header
      _
    $region7: #{tpu_custom_call.1} parent=1 // loop_header
      %s20 = sphi 0, %s24
      %p21 = scmp.ge.s32.totalorder %s20, 16
    $region8: #{tpu_custom_call.1} parent=1 // loop_header_branch
      %23 = sbr.rel (%p21) target = $region12
    $region9: #{tpu_custom_call.1} parent=1 // loop_body
      %s25 = sadd.s32 %s18, %s20
      %s26 = sld [smem:[#allocation3 + %s25]]
      %s27 = scalar_lea.vmem %s1, %s26
      %v28 = vld [vmem:[%s27] sm:$0x1]
      %v29 = vmul.f32 %v28, 5.656854
      %s30 = scalar_lea.vmem [#allocation4], %s20
      %vm31 = vcmask 253952
      %32 = vst.msk [vmem:[%s30] sm:$0x1] %vm31, %v29
    $region10: #{tpu_custom_call.1} parent=1 // loop_footer
      %s24 = sadd.s32 1, %s20
    $region11: #{tpu_custom_call.1} parent=1 // loop_footer_branch
      %19 = sbr.rel target = $region7
    $region12: #{tpu_custom_call.1} parent=1 // loop_exit
      _
    // Predicated region
    $region13: #{tpu_custom_call.1} parent=1 // pred_check
      _
    $region14: #{tpu_custom_call.1} parent=1 // pred_check_branch
      %34 = sbr.rel (0) target = $region16
    $region15: #{tpu_custom_call.1} parent=1 // pred_region
      %36 = vsyncadd [#allocation5], 0
      %s37 = sshll.u32 [#allocation4], 4
      %s38 = int_to_ptr.vmem [resolvable:$true] %s37
      %s39 = sshll.u32 %s2, 4
      %s40 = int_to_ptr.hbm [resolvable:$true] %s39
      %45 = dma.vmem_to_hbm [thread:$0]  %s38, 256, %s40, [#allocation5], 128, 128, 8
    $region16: #{tpu_custom_call.1} parent=1 // pred_fallthru
      _
    // Predicated region
    $region17: #{tpu_custom_call.1} parent=1 // pred_check
      _
    $region18: #{tpu_custom_call.1} parent=1 // pred_check_branch
      %47 = sbr.rel (0) target = $region20
    $region19: #{tpu_custom_call.1} parent=1 // pred_region
      %49 = dma.done [#allocation5], 256
    $region20: #{tpu_custom_call.1} parent=1 // pred_fallthru
      _
    %50 = vsyncpa [#allocation5], 1

</llo_original>
